<compile_context>
chip_gen: v7x
topology: tpu7x:2x2x1
jax: 0.10.0
libtpu: 0.0.40
codegen_flags: <defaults>
</compile_context>

<pallas_src>
import jax
import jax.numpy as jnp
from jax.experimental import pallas as pl
from jax.experimental.pallas import tpu as pltpu


_SQRT_2_OVER_PI = 0.7978845608028654  # sqrt(2/pi)


def _gelu_new(x):
    # GPT-J "gelu_new": 0.5*x*(1 + tanh(sqrt(2/pi)*(x + 0.044715*x^3)))
    # factored as x*(1 + 0.044715*x*x) to save one multiply.
    x2 = x * x
    return 0.5 * x * (1.0 + jnp.tanh(_SQRT_2_OVER_PI * (x * (1.0 + 0.044715 * x2))))


def gptj_mlp_kernel(x_ref, w1_ref, b1_ref, w2_ref, b2_ref, o_ref, acc_ref):
    """One grid step: (tm, D) rows x one (ti) slice of the intermediate dim.

    x_ref  : VMEM (tm, D)  bf16 input rows
    w1_ref : VMEM (D, ti)  bf16 fc_in weight slice
    b1_ref : VMEM (1, ti)  f32  fc_in bias slice
    w2_ref : VMEM (ti, D)  bf16 fc_out weight slice
    b2_ref : VMEM (1, D)   f32  fc_out bias
    o_ref  : VMEM (tm, D)  output tile (resident across the i axis)
    acc_ref: VMEM (tm, D)  f32 accumulator scratch
    """
    i = pl.program_id(1)

    # fc_in slice on the MXU (bf16 operands, f32 accumulate), bias + gelu_new
    # in f32 on the VPU/EUP (v5e has no bf16 VPU/EUP; correct everywhere).
    h = jnp.dot(x_ref[...], w1_ref[...], preferred_element_type=jnp.float32)
    h = _gelu_new(h + b1_ref[...])          # (1, ti) broadcasts over (tm, ti)

    # Partial fc_out contribution of this intermediate slice (bf16 MXU).
    partial = jnp.dot(h.astype(w2_ref.dtype), w2_ref[...],
                      preferred_element_type=jnp.float32)

    @pl.when(i == 0)
    def _():
        # First slice: overwrite (no zero-init RMW) and fold in the fc_out
        # bias so the final step is a plain cast + store.
        acc_ref[...] = partial + b2_ref[...]

    @pl.when(i > 0)
    def _():
        acc_ref[...] += partial

    @pl.when(i == pl.num_programs(1) - 1)
    def _():
        # Dropout is identity in eval mode.
        o_ref[...] = acc_ref[...].astype(o_ref.dtype)


def _round_up(x, m):
    return ((x + m - 1) // m) * m


def _vmem_footprint_bytes(tm, ti, D, cdt_bytes, out_bytes):
    """Estimate VMEM use: double-buffered pipeline blocks + f32 scratch."""
    dbl = 2 * (
        tm * D * cdt_bytes        # x tile
        + D * ti * cdt_bytes      # W_in slice
        + ti * 4                  # b_in slice (f32)
        + ti * D * cdt_bytes      # W_out slice
        + D * 4                   # b_out
        + tm * D * out_bytes      # output tile
    )
    return dbl + tm * D * 4       # f32 accumulator scratch (single buffer)


def _select_tiles(D, I, cdt_bytes, out_bytes, vmem_budget):
    """Largest tm (arithmetic intensity), then largest ti, that fits VMEM."""
    tm_cands = (1024, 768, 512, 384, 256, 192, 128, 64, 32, 16, 8)
    ti_cands = tuple(t for t in (1024, 768, 512, 384, 256, 128)
                     if t <= I and I % t == 0) or (I,)
    for tm in tm_cands:
        for ti in ti_cands:
            if _vmem_footprint_bytes(tm, ti, D, cdt_bytes, out_bytes) <= vmem_budget:
                return tm, ti
    return 8, ti_cands[-1]


def gptj_mlp_forward(hidden_states, w_in, b_in, w_out, b_out, *,
                     tm=None, ti=None, compute_dtype=jnp.bfloat16):
    """Pallas implementation of GPTJMLP.forward (eval mode).

    hidden_states: (B, S, D)
    w_in : (D, I)   b_in : (I,)
    w_out: (I, D)   b_out: (D,)
    returns (B, S, D) in hidden_states.dtype.
    """
    B, S, D = hidden_states.shape
    I = w_in.shape[1]
    M = B * S
    out_dtype = hidden_states.dtype
    cdt_bytes = jnp.dtype(compute_dtype).itemsize
    out_bytes = jnp.dtype(out_dtype).itemsize

    # VMEM capacity: 128 MiB on v5e/v6e, 64 MiB per core on v7x. Be
    # conservative if the query is unavailable.
    try:
        vmem_cap = int(pltpu.get_tpu_info().vmem_capacity_bytes)
    except Exception:
        vmem_cap = 64 * 1024 * 1024
    vmem_budget = min(100 * 1024 * 1024, int(vmem_cap * 0.75))

    auto_tm, auto_ti = _select_tiles(D, I, cdt_bytes, out_bytes, vmem_budget)
    if tm is None:
        tm = auto_tm
    if ti is None:
        ti = auto_ti
    assert I % ti == 0, (I, ti)

    # Shrink tm for small M (decode / tests); keep >=2 parallel m tiles when
    # possible so both v7x TensorCores get work.
    tm = min(tm, _round_up(M, 8))
    if M > 8 and pl.cdiv(M, tm) < 2:
        tm = max(8, _round_up(pl.cdiv(M, 2), 8))

    # Pad rows to a multiple of tm (extra zero rows are computed and sliced off).
    M_pad = _round_up(M, tm)
    x2 = hidden_states.reshape(M, D).astype(compute_dtype)
    if M_pad != M:
        x2 = jnp.pad(x2, ((0, M_pad - M), (0, 0)))

    w1 = w_in.astype(compute_dtype)
    w2 = w_out.astype(compute_dtype)
    b1 = b_in.reshape(1, I).astype(jnp.float32)
    b2 = b_out.reshape(1, D).astype(jnp.float32)

    grid = (M_pad // tm, I // ti)

    footprint = _vmem_footprint_bytes(tm, ti, D, cdt_bytes, out_bytes)
    vmem_limit = min(int(vmem_cap * 0.9), footprint + (16 << 20))

    out = pl.pallas_call(
        gptj_mlp_kernel,
        out_shape=jax.ShapeDtypeStruct((M_pad, D), out_dtype),
        grid_spec=pltpu.PrefetchScalarGridSpec(
            num_scalar_prefetch=0,
            grid=grid,
            in_specs=[
                pl.BlockSpec((tm, D), lambda m, i: (m, 0)),   # x rows
                pl.BlockSpec((D, ti), lambda m, i: (0, i)),   # W_in slice
                pl.BlockSpec((1, ti), lambda m, i: (0, i)),   # b_in slice
                pl.BlockSpec((ti, D), lambda m, i: (i, 0)),   # W_out slice
                pl.BlockSpec((1, D),  lambda m, i: (0, 0)),   # b_out
            ],
            out_specs=pl.BlockSpec((tm, D), lambda m, i: (m, 0)),
            scratch_shapes=[pltpu.VMEM((tm, D), jnp.float32)],
        ),
        compiler_params=pltpu.CompilerParams(
            dimension_semantics=("parallel", "arbitrary"),
            vmem_limit_bytes=vmem_limit,
        ),
    )(x2, w1, b1, w2, b2)

    if M_pad != M:
        out = out[:M]
    return out.reshape(B, S, D)


def _reference_mlp(hidden_states, w_in, b_in, w_out, b_out):
    h = jnp.dot(hidden_states, w_in) + b_in
    h = _gelu_new(h)
    h = jnp.dot(h, w_out) + b_out
    return h


if __name__ == "__main__":
    # Small, module-consistent shapes: intermediate_size = 4 * n_embd (GPT-J).
    B, S = 2, 8          # batch, sequence length
    D = 128              # n_embd
    I = 4 * D            # intermediate_size = 512

    key = jax.random.PRNGKey(0)
    k_x, k_w1, k_b1, k_w2, k_b2 = jax.random.split(key, 5)

    hidden_states = jax.random.normal(k_x, (B, S, D), dtype=jnp.float32)
    # Weights stored pre-transposed relative to nn.Linear: (in, out).
    w_in = jax.random.normal(k_w1, (D, I), dtype=jnp.float32) * 0.02
    b_in = jax.random.normal(k_b1, (I,), dtype=jnp.float32) * 0.02
    w_out = jax.random.normal(k_w2, (I, D), dtype=jnp.float32) * 0.02
    b_out = jax.random.normal(k_b2, (D,), dtype=jnp.float32) * 0.02

    out = gptj_mlp_forward(hidden_states, w_in, b_in, w_out, b_out)
    out = jax.block_until_ready(out)

    ref = _reference_mlp(hidden_states, w_in, b_in, w_out, b_out)
    assert out.shape == (B, S, D), out.shape
    # bf16 MXU path vs f32 reference -> loosened tolerance.
    err = float(jnp.max(jnp.abs(out.astype(jnp.float32) - ref)))
    assert err < 2e-2, err

    # Also exercise the ragged-M / padding path (M = 5 rows).
    hs_small = hidden_states[:1, :5]
    out_small = jax.block_until_ready(
        gptj_mlp_forward(hs_small, w_in, b_in, w_out, b_out))
    ref_small = _reference_mlp(hs_small, w_in, b_in, w_out, b_out)
    err_small = float(jnp.max(jnp.abs(out_small.astype(jnp.float32) - ref_small)))
    assert out_small.shape == (1, 5, D), out_small.shape
    assert err_small < 2e-2, err_small

    print("KERNEL_OK")
</pallas_src>

<mosaic_0001>
module attributes {stable_mosaic.version = 11 : i64} {
  func.func @gptj_mlp_kernel(%arg0: i32, %arg1: i32, %arg2: memref<8x128xbf16, #tpu.memory_space<vmem>>, %arg3: memref<128x512xbf16, #tpu.memory_space<vmem>>, %arg4: memref<1x512xf32, #tpu.memory_space<vmem>>, %arg5: memref<512x128xbf16, #tpu.memory_space<vmem>>, %arg6: memref<1x128xf32, #tpu.memory_space<vmem>>, %arg7: memref<8x128xf32, #tpu.memory_space<vmem>>, %arg8: memref<8x128xf32, #tpu.memory_space<vmem>>) attributes {dimension_semantics = [#tpu.dimension_semantics<parallel>, #tpu.dimension_semantics<arbitrary>], iteration_bounds = array<i64: 2, 1>, scalar_prefetch = 0 : i64, scratch_operands = 1 : i64, tpu.core_type = #tpu.core_type<tc>, window_params = [{transform_indices = @transform_0, window_bounds = array<i64: 8, 128>}, {transform_indices = @transform_1, window_bounds = array<i64: 128, 512>}, {transform_indices = @transform_2, window_bounds = array<i64: 1, 512>}, {transform_indices = @transform_3, window_bounds = array<i64: 512, 128>}, {pipeline_mode = #tpu.pipeline_mode<synchronous>, transform_indices = @transform_4, window_bounds = array<i64: 1, 128>}, {transform_indices = @transform_5, window_bounds = array<i64: 8, 128>}]} {
    %c0 = arith.constant 0 : index
    %c0_0 = arith.constant 0 : index
    %0 = vector.load %arg2[%c0, %c0_0] : memref<8x128xbf16, #tpu.memory_space<vmem>>, vector<8x128xbf16>
    %c0_1 = arith.constant 0 : index
    %c0_2 = arith.constant 0 : index
    %1 = vector.load %arg3[%c0_1, %c0_2] : memref<128x512xbf16, #tpu.memory_space<vmem>>, vector<128x512xbf16>
    %cst = arith.constant dense<0.000000e+00> : vector<8x512xf32>
    %2 = tpu.matmul %0, %1, %cst {dimension_numbers = #tpu.dot_dimension_numbers<[1], [0], [0], [1], [0, 0, 1, 1], [], []>} : vector<8x128xbf16>, vector<128x512xbf16>, vector<8x512xf32> -> vector<8x512xf32>
    %c0_3 = arith.constant 0 : index
    %c0_4 = arith.constant 0 : index
    %3 = vector.load %arg4[%c0_3, %c0_4] : memref<1x512xf32, #tpu.memory_space<vmem>>, vector<1x512xf32>
    %4 = vector.broadcast %3 : vector<1x512xf32> to vector<8x512xf32>
    %5 = arith.addf %2, %4 : vector<8x512xf32>
    %6 = arith.mulf %5, %5 : vector<8x512xf32>
    %cst_5 = arith.constant 5.000000e-01 : f32
    %7 = vector.broadcast %cst_5 : f32 to vector<8x512xf32>
    %8 = arith.mulf %7, %5 : vector<8x512xf32>
    %cst_6 = arith.constant 4.471500e-02 : f32
    %9 = vector.broadcast %cst_6 : f32 to vector<8x512xf32>
    %10 = arith.mulf %9, %6 : vector<8x512xf32>
    %cst_7 = arith.constant 1.000000e+00 : f32
    %11 = vector.broadcast %cst_7 : f32 to vector<8x512xf32>
    %12 = arith.addf %11, %10 : vector<8x512xf32>
    %13 = arith.mulf %5, %12 : vector<8x512xf32>
    %cst_8 = arith.constant 0.797884583 : f32
    %14 = vector.broadcast %cst_8 : f32 to vector<8x512xf32>
    %15 = arith.mulf %14, %13 : vector<8x512xf32>
    %16 = math.tanh %15 : vector<8x512xf32>
    %cst_9 = arith.constant 1.000000e+00 : f32
    %17 = vector.broadcast %cst_9 : f32 to vector<8x512xf32>
    %18 = arith.addf %17, %16 : vector<8x512xf32>
    %19 = arith.mulf %8, %18 : vector<8x512xf32>
    %20 = arith.truncf %19 : vector<8x512xf32> to vector<8x512xbf16>
    %c0_10 = arith.constant 0 : index
    %c0_11 = arith.constant 0 : index
    %21 = vector.load %arg5[%c0_10, %c0_11] : memref<512x128xbf16, #tpu.memory_space<vmem>>, vector<512x128xbf16>
    %cst_12 = arith.constant dense<0.000000e+00> : vector<8x128xf32>
    %22 = tpu.matmul %20, %21, %cst_12 {dimension_numbers = #tpu.dot_dimension_numbers<[1], [0], [0], [1], [0, 0, 1, 1], [], []>} : vector<8x512xbf16>, vector<512x128xbf16>, vector<8x128xf32> -> vector<8x128xf32>
    %c0_i32 = arith.constant 0 : i32
    %23 = arith.cmpi eq, %arg1, %c0_i32 : i32
    %24 = arith.extui %23 : i1 to i32
    %c0_i32_13 = arith.constant 0 : i32
    %25 = arith.cmpi ne, %24, %c0_i32_13 : i32
    scf.if %25 {
      %c0_18 = arith.constant 0 : index
      %c0_19 = arith.constant 0 : index
      %32 = vector.load %arg6[%c0_18, %c0_19] : memref<1x128xf32, #tpu.memory_space<vmem>>, vector<1x128xf32>
      %33 = vector.broadcast %32 : vector<1x128xf32> to vector<8x128xf32>
      %34 = arith.addf %22, %33 : vector<8x128xf32>
      %c0_20 = arith.constant 0 : index
      %c0_21 = arith.constant 0 : index
      %35 = vector.load %arg8[%c0_20, %c0_21] : memref<8x128xf32, #tpu.memory_space<vmem>>, vector<8x128xf32>
      tpu.vector_store %arg8[%c0_20, %c0_21], %34 {strides = array<i32>} : memref<8x128xf32, #tpu.memory_space<vmem>>, vector<8x128xf32>,
    } else {
    }
    %c0_i32_14 = arith.constant 0 : i32
    %26 = arith.cmpi sgt, %arg1, %c0_i32_14 : i32
    %27 = arith.extui %26 : i1 to i32
    %c0_i32_15 = arith.constant 0 : i32
    %28 = arith.cmpi ne, %27, %c0_i32_15 : i32
    scf.if %28 {
      %c0_18 = arith.constant 0 : index
      %c0_19 = arith.constant 0 : index
      %32 = vector.load %arg8[%c0_18, %c0_19] : memref<8x128xf32, #tpu.memory_space<vmem>>, vector<8x128xf32>
      %33 = arith.addf %32, %22 : vector<8x128xf32>
      %c0_20 = arith.constant 0 : index
      %c0_21 = arith.constant 0 : index
      %34 = vector.load %arg8[%c0_20, %c0_21] : memref<8x128xf32, #tpu.memory_space<vmem>>, vector<8x128xf32>
      tpu.vector_store %arg8[%c0_20, %c0_21], %33 {strides = array<i32>} : memref<8x128xf32, #tpu.memory_space<vmem>>, vector<8x128xf32>,
    } else {
    }
    %c0_i32_16 = arith.constant 0 : i32
    %29 = arith.cmpi eq, %arg1, %c0_i32_16 : i32
    %30 = arith.extui %29 : i1 to i32
    %c0_i32_17 = arith.constant 0 : i32
    %31 = arith.cmpi ne, %30, %c0_i32_17 : i32
    scf.if %31 {
      %c0_18 = arith.constant 0 : index
      %c0_19 = arith.constant 0 : index
      %32 = vector.load %arg8[%c0_18, %c0_19] : memref<8x128xf32, #tpu.memory_space<vmem>>, vector<8x128xf32>
      %c0_20 = arith.constant 0 : index
      %c0_21 = arith.constant 0 : index
      %33 = vector.load %arg7[%c0_20, %c0_21] : memref<8x128xf32, #tpu.memory_space<vmem>>, vector<8x128xf32>
      tpu.vector_store %arg7[%c0_20, %c0_21], %32 {strides = array<i32>} : memref<8x128xf32, #tpu.memory_space<vmem>>, vector<8x128xf32>,
    } else {
    }
    return
  }
  func.func @transform_0(%arg0: i32, %arg1: i32) -> (i32, i32) {
    %c0_i32 = arith.constant 0 : i32
    %c0_i32_0 = arith.constant 0 : i32
    return %arg0, %c0_i32 : i32, i32
  }
  func.func @transform_1(%arg0: i32, %arg1: i32) -> (i32, i32) {
    %c0_i32 = arith.constant 0 : i32
    %c0_i32_0 = arith.constant 0 : i32
    return %c0_i32, %arg1 : i32, i32
  }
  func.func @transform_2(%arg0: i32, %arg1: i32) -> (i32, i32) {
    %c0_i32 = arith.constant 0 : i32
    %c0_i32_0 = arith.constant 0 : i32
    return %c0_i32, %arg1 : i32, i32
  }
  func.func @transform_3(%arg0: i32, %arg1: i32) -> (i32, i32) {
    %c0_i32 = arith.constant 0 : i32
    %c0_i32_0 = arith.constant 0 : i32
    return %arg1, %c0_i32 : i32, i32
  }
  func.func @transform_4(%arg0: i32, %arg1: i32) -> (i32, i32) {
    %c0_i32 = arith.constant 0 : i32
    %c0_i32_0 = arith.constant 0 : i32
    %c0_i32_1 = arith.constant 0 : i32
    return %c0_i32, %c0_i32_0 : i32, i32
  }
  func.func @transform_5(%arg0: i32, %arg1: i32) -> (i32, i32) {
    %c0_i32 = arith.constant 0 : i32
    %c0_i32_0 = arith.constant 0 : i32
    return %arg0, %c0_i32 : i32, i32
  }
}

</mosaic_0001>

<llo_original>
// kernel: tpu_custom_call.1
$region0: #{tpu_custom_call.1}
  #allocation0 [shape = 'u32[]', space=smem, size = 0x4, offset = 0x4, fixed_abs, tag = 'smem constant byte address 0x4 - core index']
  #allocation1 [shape = 'u32[144,128]{1,0:T(1,128)}', space=vmem, size = 0x12000, scoped, tag = 'internal scratch']
  #allocation2 [shape = 'f32[8,128]{1,0:T(8,128)}', space=vmem, size = 0x1000, scoped, tag = 'scratch operand']
  %s0 = inlined_call_operand.hbm [shape: bf16[16,128], index: 0, kind: input, shape index: {}]
  %s1 = inlined_call_operand.hbm [shape: bf16[128,512], index: 1, kind: input, shape index: {}]
  %s2 = inlined_call_operand.vmem [shape: f32[1,512], index: 2, kind: input, shape index: {}]
  %s3 = inlined_call_operand.hbm [shape: bf16[512,128], index: 3, kind: input, shape index: {}]
  %s4 = inlined_call_operand.vmem [shape: f32[1,128], index: 4, kind: input, shape index: {}]
  %s5 = inlined_call_operand.hbm [shape: f32[16,128], index: 5, kind: output, shape index: {}]
  %s6 = sld [smem:[#allocation0]]
  $region77: #{tpu_custom_call.1} parent=0
    _
  %s8 = ssub.s32 1, %s6
  %s9 = scalar_select 0, %s8, %s6
  $region1: #{tpu_custom_call.1} parent=0
    #allocation3 [shape = 'u8[4096]{0}', space=vmem, size = 0x1000, scoped, tag = 'input window, operand 0']
    #allocation4 [shape = 's32[2]{0}', space=sflag, size = 0x8, scoped, tag = 'scoped memory for tpu_custom_call.1']
    #allocation5 [shape = 's32[2]{0}', space=sflag, size = 0x8, scoped, tag = 'scoped memory for tpu_custom_call.1']
    #allocation6 [shape = 'u8[131072]{0}', space=vmem, size = 0x20000, scoped, tag = 'input window, operand 1, single buffered']
    #allocation7 [shape = 's32[1]{0}', space=sflag, size = 0x4, scoped, tag = 'scoped memory for tpu_custom_call.1']
    #allocation8 [shape = 'u8[131072]{0}', space=vmem, size = 0x20000, scoped, tag = 'input window, operand 3, single buffered']
    #allocation9 [shape = 'u8[8192]{0}', space=vmem, size = 0x2000, scoped, tag = 'output window, operand 0']
    %10 = vsyncpa [#allocation4], 0
    %s11 = scalar_lea.sflag [#allocation4], 1
    %12 = vsyncpa %s11, 0
    %13 = vsyncpa [#allocation7], 0
    %14 = vsyncpa [#allocation5], 0
    %s15 = scalar_lea.sflag [#allocation5], 1
    %16 = vsyncpa %s15, 0
    loop: start=0, step=1, limit=4
    $region2: #{tpu_custom_call.1} parent=1 // loop_pre_header
      _
    $region3: #{tpu_custom_call.1} parent=1 // loop_header
      %s18 = sphi 0, %s22
      %p19 = scmp.ge.s32.totalorder %s18, 4
      %s25 = sphi 0, %s37
      %s26 = sphi 0, %s33
      %s27 = sphi 0, %s25
      %s28 = sphi 0, %s26
      %s29 = sphi 0, %s27
      %s30 = sphi 0, %s28
      %s40 = sphi 0, %s42
      %s43 = sphi 0, %s40
      %s44 = sphi 0, %s43
      %s60 = sphi 0, %s44
      %s66 = sphi 0, %s68
      %s69 = sphi 0, %s66
      %s70 = sphi 0, %s69
      %s86 = sphi 0, %s70
      %s92 = sphi 0, %s94
      %s95 = sphi 0, %s92
      %s96 = sphi 0, %s95
      %s112 = sphi 0, %s96
      %s118 = sphi 0, %s120
      %s121 = sphi 0, %s118
      %s122 = sphi 0, %s121
      %s138 = sphi 0, %s122
      %s142 = sphi 0, %s142
      %s144 = sphi 0, %s142
      %s145 = sphi 0, %s144
      %s159 = sphi 0, %s145
      %s165 = sphi 0, %s167
      %s168 = sphi 0, %s165
      %s169 = sphi 0, %s168
      %s185 = sphi 0, %s169
    $region4: #{tpu_custom_call.1} parent=1 // loop_header_branch
      %21 = sbr.rel (%p19) target = $region8
    $region5: #{tpu_custom_call.1} parent=1 // loop_body
      %s23 = ssub.s32 %s18, 1
      %s24 = ssub.s32 %s18, 2
      %s31 = sadd.s32 1, %s26
      %p32 = scmp.ge.s32.totalorder %s31, 1
      %s33 = scalar_select %p32, 0, %s31
      %s34 = sadd.s32 1, %s25
      %s35 = scalar_select %p32, %s34, %s25
      %p36 = scmp.ge.s32.totalorder %s35, 2
      %s37 = scalar_select %p36, 0, %s35
      %s38 = ssub.s32 %s25, %s37
      %p39 = scmp.eq.s32.totalorder %s38, 0
      %s41 = sadd.s32 %s40, 1
      %s42 = scalar_select %p39, %s40, %s41
      %p45 = pneg %p39
      %p46 = scmp.eq.s32.totalorder %s18, 1
      %p47 = por %p45, %p46
      %p48 = scmp.ne.s32.totalorder %s40, %s43
      %p49 = scmp.eq.s32.totalorder %s18, 0
      %p50 = por %p48, %p49
      %p51 = scmp.ne.s32.totalorder %s40, %s43
      %p52 = scmp.eq.s32.totalorder %s23, 1
      %p53 = por %p51, %p52
      %p54 = scmp.ne.s32.totalorder %s43, %s44
      %p55 = scmp.eq.s32.totalorder %s23, 0
      %p56 = por %p54, %p55
      %p57 = scmp.ne.s32.totalorder %s43, %s44
      %p58 = scmp.eq.s32.totalorder %s24, 1
      %p59 = por %p57, %p58
      %p61 = scmp.ne.s32.totalorder %s44, %s60
      %p62 = scmp.eq.s32.totalorder %s24, 0
      %p63 = por %p61, %p62
      %s64 = ssub.s32 %s26, %s33
      %p65 = scmp.eq.s32.totalorder %s64, 0
      %s67 = sadd.s32 %s66, 1
      %s68 = scalar_select %p65, %s66, %s67
      %p71 = pneg %p65
      %p72 = scmp.eq.s32.totalorder %s18, 1
      %p73 = por %p71, %p72
      %p74 = scmp.ne.s32.totalorder %s66, %s69
      %p75 = scmp.eq.s32.totalorder %s18, 0
      %p76 = por %p74, %p75
      %p77 = scmp.ne.s32.totalorder %s66, %s69
      %p78 = scmp.eq.s32.totalorder %s23, 1
      %p79 = por %p77, %p78
      %p80 = scmp.ne.s32.totalorder %s69, %s70
      %p81 = scmp.eq.s32.totalorder %s23, 0
      %p82 = por %p80, %p81
      %p83 = scmp.ne.s32.totalorder %s69, %s70
      %p84 = scmp.eq.s32.totalorder %s24, 1
      %p85 = por %p83, %p84
      %p87 = scmp.ne.s32.totalorder %s70, %s86
      %p88 = scmp.eq.s32.totalorder %s24, 0
      %p89 = por %p87, %p88
      %s90 = ssub.s32 %s26, %s33
      %p91 = scmp.eq.s32.totalorder %s90, 0
      %s93 = sadd.s32 %s92, 1
      %s94 = scalar_select %p91, %s92, %s93
      %p97 = pneg %p91
      %p98 = scmp.eq.s32.totalorder %s18, 1
      %p99 = por %p97, %p98
      %p100 = scmp.ne.s32.totalorder %s92, %s95
      %p101 = scmp.eq.s32.totalorder %s18, 0
      %p102 = por %p100, %p101
      %p103 = scmp.ne.s32.totalorder %s92, %s95
      %p104 = scmp.eq.s32.totalorder %s23, 1
      %p105 = por %p103, %p104
      %p106 = scmp.ne.s32.totalorder %s95, %s96
      %p107 = scmp.eq.s32.totalorder %s23, 0
      %p108 = por %p106, %p107
      %p109 = scmp.ne.s32.totalorder %s95, %s96
      %p110 = scmp.eq.s32.totalorder %s24, 1
      %p111 = por %p109, %p110
      %p113 = scmp.ne.s32.totalorder %s96, %s112
      %p114 = scmp.eq.s32.totalorder %s24, 0
      %p115 = por %p113, %p114
      %s116 = ssub.s32 %s26, %s33
      %p117 = scmp.eq.s32.totalorder %s116, 0
      %s119 = sadd.s32 %s118, 1
      %s120 = scalar_select %p117, %s118, %s119
      %p123 = pneg %p117
      %p124 = scmp.eq.s32.totalorder %s18, 1
      %p125 = por %p123, %p124
      %p126 = scmp.ne.s32.totalorder %s118, %s121
      %p127 = scmp.eq.s32.totalorder %s18, 0
      %p128 = por %p126, %p127
      %p129 = scmp.ne.s32.totalorder %s118, %s121
      %p130 = scmp.eq.s32.totalorder %s23, 1
      %p131 = por %p129, %p130
      %p132 = scmp.ne.s32.totalorder %s121, %s122
      %p133 = scmp.eq.s32.totalorder %s23, 0
      %p134 = por %p132, %p133
      %p135 = scmp.ne.s32.totalorder %s121, %s122
      %p136 = scmp.eq.s32.totalorder %s24, 1
      %p137 = por %p135, %p136
      %p139 = scmp.ne.s32.totalorder %s122, %s138
      %p140 = scmp.eq.s32.totalorder %s24, 0
      %p141 = por %p139, %p140
      %s143 = sadd.s32 %s142, 1
      %p146 = scmp.eq.s32.totalorder %s18, 1
      %p147 = scmp.ne.s32.totalorder %s142, %s144
      %p148 = scmp.eq.s32.totalorder %s18, 0
      %p149 = por %p147, %p148
      %p150 = scmp.ne.s32.totalorder %s142, %s144
      %p151 = scmp.eq.s32.totalorder %s23, 1
      %p152 = por %p150, %p151
      %p153 = scmp.ne.s32.totalorder %s144, %s145
      %p154 = scmp.eq.s32.totalorder %s23, 0
      %p155 = por %p153, %p154
      %p156 = scmp.ne.s32.totalorder %s144, %s145
      %p157 = scmp.eq.s32.totalorder %s24, 1
      %p158 = por %p156, %p157
      %p160 = scmp.ne.s32.totalorder %s145, %s159
      %p161 = scmp.eq.s32.totalorder %s24, 0
      %p162 = por %p160, %p161
      %s163 = ssub.s32 %s25, %s37
      %p164 = scmp.eq.s32.totalorder %s163, 0
      %s166 = sadd.s32 %s165, 1
      %s167 = scalar_select %p164, %s165, %s166
      %p170 = pneg %p164
      %p171 = scmp.eq.s32.totalorder %s18, 1
      %p172 = por %p170, %p171
      %p173 = scmp.ne.s32.totalorder %s165, %s168
      %p174 = scmp.eq.s32.totalorder %s18, 0
      %p175 = por %p173, %p174
      %p176 = scmp.ne.s32.totalorder %s165, %s168
      %p177 = scmp.eq.s32.totalorder %s23, 1
      %p178 = por %p176, %p177
      %p179 = scmp.ne.s32.totalorder %s168, %s169
      %p180 = scmp.eq.s32.totalorder %s23, 0
      %p181 = por %p179, %p180
      %p182 = scmp.ne.s32.totalorder %s168, %s169
      %p183 = scmp.eq.s32.totalorder %s24, 1
      %p184 = por %p182, %p183
      %p186 = scmp.ne.s32.totalorder %s169, %s185
      %p187 = scmp.eq.s32.totalorder %s24, 0
      %p188 = por %p186, %p187
      %p189 = scmp.le.s32.totalorder 1, %s18
      %p190 = scmp.lt.s32.totalorder %s18, 3
      %p191 = pnand %p189, %p190
      %p192 = pneg %p191
      // Predicated region
      $region9: #{tpu_custom_call.1} parent=5 // pred_check
        _
      $region10: #{tpu_custom_call.1} parent=5 // pred_check_branch
        %194 = sbr.rel (%p191) target = $region12
      $region11: #{tpu_custom_call.1} parent=5 // pred_region
        %s195 = ssub.s32 %s18, 1
        // Predicated region
        $region13: #{tpu_custom_call.1} parent=11 // pred_check
          %p196 = pneg %p82
        $region14: #{tpu_custom_call.1} parent=11 // pred_check_branch
          %198 = sbr.rel (%p196) target = $region16
        $region15: #{tpu_custom_call.1} parent=11 // pred_region
          %s199 = smul.u32 4, %s28
          %s201 = ssub.s32 4096, 4096
          %202 = vsyncadd [#allocation7], %s201
          %s203 = smul.addr %s199, 64
          %s204 = scalar_lea.hbm %s1, %s203
          %s205 = sshll.u32 [#allocation6], 4
          %s206 = int_to_ptr.vmem [resolvable:$true] %s205
          %211 = dma.hbm_to_vmem [thread:$0]  %s204, 4096, %s206, [#allocation7], 256, 256, 16
        $region16: #{tpu_custom_call.1} parent=11 // pred_fallthru
          _
        // Predicated region
        $region17: #{tpu_custom_call.1} parent=11 // pred_check
          %p212 = pneg %p108
        $region18: #{tpu_custom_call.1} parent=11 // pred_check_branch
          %214 = sbr.rel (%p212) target = $region20
        $region19: #{tpu_custom_call.1} parent=11 // pred_region
          %s215 = smul.u32 4, %s28
          %p216 = scmp.lt.s32.totalorder %s215, 3
          %s217 = scalar_select %p216, %s215, 3
          %s218 = scalar_lea.vmem %s2, %s217
          %s219 = smul.u32 4, %s28
        $region20: #{tpu_custom_call.1} parent=11 // pred_fallthru
          _
        // Predicated region
        $region21: #{tpu_custom_call.1} parent=11 // pred_check
          %p220 = pneg %p134
        $region22: #{tpu_custom_call.1} parent=11 // pred_check_branch
          %222 = sbr.rel (%p220) target = $region24
        $region23: #{tpu_custom_call.1} parent=11 // pred_region
          %s223 = smul.u32 64, %s28
          %s225 = ssub.s32 4096, 4096
          %226 = vsyncadd [#allocation7], %s225
          %s227 = smul.addr %s223, 64
          %s228 = scalar_lea.hbm %s3, %s227
          %s229 = sshll.u32 [#allocation8], 4
          %s230 = int_to_ptr.vmem [resolvable:$true] %s229
          %235 = dma.hbm_to_vmem [thread:$0]  %s228, 4096, %s230, [#allocation7], 64, 64, 4
        $region24: #{tpu_custom_call.1} parent=11 // pred_fallthru
          _
        // Predicated region
        $region25: #{tpu_custom_call.1} parent=11 // pred_check
          %p236 = pneg %p155
        $region26: #{tpu_custom_call.1} parent=11 // pred_check_branch
          %238 = sbr.rel (%p236) target = $region28
        $region27: #{tpu_custom_call.1} parent=11 // pred_region
          _
        $region28: #{tpu_custom_call.1} parent=11 // pred_fallthru
          _
      $region12: #{tpu_custom_call.1} parent=5 // pred_fallthru
        _
      %p239 = scmp.lt.s32.totalorder %s18, 2
      // Predicated region
      $region29: #{tpu_custom_call.1} parent=5 // pred_check
        %p240 = pneg %p239
      $region30: #{tpu_custom_call.1} parent=5 // pred_check_branch
        %242 = sbr.rel (%p240) target = $region32
      $region31: #{tpu_custom_call.1} parent=5 // pred_region
        // Predicated region
        $region33: #{tpu_custom_call.1} parent=31 // pred_check
          %p243 = pneg %p50
        $region34: #{tpu_custom_call.1} parent=31 // pred_check_branch
          %245 = sbr.rel (%p243) target = $region36
        $region35: #{tpu_custom_call.1} parent=31 // pred_region
          %s246 = sand.u32 %s40, 1
          %s247 = scalar_lea.sflag [#allocation4], %s246
          %s248 = sand.u32 %s40, 1
          %s249 = smul.addr %s248, 4
          %s250 = scalar_lea.vmem [#allocation3], %s249
          %s252 = ssub.s32 64, 64
          %253 = vsyncadd %s247, %s252
          %s254 = smul.addr %s25, 64
          %s255 = scalar_lea.hbm %s0, %s254
          %s257 = sshll.u32 %s250, 4
          %s258 = int_to_ptr.vmem [resolvable:$true] %s257
          %260 = dma.hbm_to_vmem [thread:$0]  %s255, 64, %s258, %s247
        $region36: #{tpu_custom_call.1} parent=31 // pred_fallthru
          _
      $region32: #{tpu_custom_call.1} parent=5 // pred_fallthru
        _
      %p261 = scmp.le.s32.totalorder 1, %s18
      %p262 = scmp.lt.s32.totalorder %s18, 3
      %p263 = pnand %p261, %p262
      %p264 = pneg %p263
      // Predicated region
      $region37: #{tpu_custom_call.1} parent=5 // pred_check
        _
      $region38: #{tpu_custom_call.1} parent=5 // pred_check_branch
        %266 = sbr.rel (%p263) target = $region40
      $region39: #{tpu_custom_call.1} parent=5 // pred_region
        %s267 = ssub.s32 %s18, 1
        %s268 = sand.u32 %s43, 1
        %s269 = scalar_lea.sflag [#allocation4], %s268
        %s270 = sand.u32 %s43, 1
        %s271 = smul.addr %s270, 4
        %s272 = scalar_lea.vmem [#allocation3], %s271
        // Predicated region
        $region41: #{tpu_custom_call.1} parent=39 // pred_check
          %p273 = pneg %p56
        $region42: #{tpu_custom_call.1} parent=39 // pred_check_branch
          %275 = sbr.rel (%p273) target = $region44
        $region43: #{tpu_custom_call.1} parent=39 // pred_region
          %276 = dma.done %s269, 64
        $region44: #{tpu_custom_call.1} parent=39 // pred_fallthru
          _
        // Predicated region
        $region45: #{tpu_custom_call.1} parent=39 // pred_check
          %p277 = pneg %p82
        $region46: #{tpu_custom_call.1} parent=39 // pred_check_branch
          %279 = sbr.rel (%p277) target = $region48
        $region47: #{tpu_custom_call.1} parent=39 // pred_region
          %280 = dma.done [#allocation7], 4096
        $region48: #{tpu_custom_call.1} parent=39 // pred_fallthru
          _
        // Predicated region
        $region49: #{tpu_custom_call.1} parent=39 // pred_check
          %p281 = pneg %p134
        $region50: #{tpu_custom_call.1} parent=39 // pred_check_branch
          %283 = sbr.rel (%p281) target = $region52
        $region51: #{tpu_custom_call.1} parent=39 // pred_region
          %284 = dma.done [#allocation7], 4096
        $region52: #{tpu_custom_call.1} parent=39 // pred_fallthru
          _
        %s285 = sand.u32 %s43, 1
        %s286 = scalar_lea.sflag [#allocation4], %s285
        %s287 = sand.u32 %s43, 1
        %s288 = smul.addr %s287, 4
        %s289 = scalar_lea.vmem [#allocation3], %s288
        %p290 = pneg %p56
        %p291 = pneg %p53
        %p292 = pneg %p82
        %p293 = pneg %p79
        %s294 = smul.u32 4, %s28
        %p295 = scmp.lt.s32.totalorder %s294, 3
        %s296 = scalar_select %p295, %s294, 3
        %s297 = scalar_lea.vmem %s2, %s296
        %p298 = pneg %p108
        %p299 = pneg %p105
        %p300 = pneg %p134
        %p301 = pneg %p131
        %p302 = pneg %p155
        %p303 = pneg %p152
        %p304 = pneg %p181
        %p305 = pneg %p178
        %s306 = sand.u32 %s168, 1
        %s307 = scalar_lea.sflag [#allocation5], %s306
        %s308 = sand.u32 %s168, 1
        %s309 = smul.addr %s308, 8
        %s310 = scalar_lea.vmem [#allocation9], %s309
        %s311 = smul.u32 4, %s28
        %s312 = smul.u32 4, %s28
        %p313 = scmp.lt.s32.totalorder %s312, 3
        %s314 = scalar_select %p313, %s312, 3
        %s315 = scalar_lea.vmem %s2, %s314
        %s316 = smul.u32 4, %s28
        %s317 = smul.u32 64, %s28
        %v319 = vld [vmem:[%s272] sm:$0xf]
        %v320 = vld [vmem:[#allocation6] sm:$0xff]
        %v321 = vld [vmem:[#allocation6 + $0x8] sm:$0xff]
        %v322 = vld [vmem:[#allocation6 + $0x10] sm:$0xff]
        %v323 = vld [vmem:[#allocation6 + $0x18] sm:$0xff]
        %v324 = vld [vmem:[#allocation6 + $0x20] sm:$0xff]
        %v325 = vld [vmem:[#allocation6 + $0x28] sm:$0xff]
        %v326 = vld [vmem:[#allocation6 + $0x30] sm:$0xff]
        %v327 = vld [vmem:[#allocation6 + $0x38] sm:$0xff]
        %v328 = vld [vmem:[#allocation6 + $0x40] sm:$0xff]
        %v329 = vld [vmem:[#allocation6 + $0x48] sm:$0xff]
        %v330 = vld [vmem:[#allocation6 + $0x50] sm:$0xff]
        %v331 = vld [vmem:[#allocation6 + $0x58] sm:$0xff]
        %v332 = vld [vmem:[#allocation6 + $0x60] sm:$0xff]
        %v333 = vld [vmem:[#allocation6 + $0x68] sm:$0xff]
        %v334 = vld [vmem:[#allocation6 + $0x70] sm:$0xff]
        %v335 = vld [vmem:[#allocation6 + $0x78] sm:$0xff]
        %v336 = vld [vmem:[#allocation6 + $0x80] sm:$0xff]
        %v337 = vld [vmem:[#allocation6 + $0x88] sm:$0xff]
        %v338 = vld [vmem:[#allocation6 + $0x90] sm:$0xff]
        %v339 = vld [vmem:[#allocation6 + $0x98] sm:$0xff]
        %v340 = vld [vmem:[#allocation6 + $0xa0] sm:$0xff]
        %v341 = vld [vmem:[#allocation6 + $0xa8] sm:$0xff]
        %v342 = vld [vmem:[#allocation6 + $0xb0] sm:$0xff]
        %v343 = vld [vmem:[#allocation6 + $0xb8] sm:$0xff]
        %v344 = vld [vmem:[#allocation6 + $0xc0] sm:$0xff]
        %v345 = vld [vmem:[#allocation6 + $0xc8] sm:$0xff]
        %v346 = vld [vmem:[#allocation6 + $0xd0] sm:$0xff]
        %v347 = vld [vmem:[#allocation6 + $0xd8] sm:$0xff]
        %v348 = vld [vmem:[#allocation6 + $0xe0] sm:$0xff]
        %v349 = vld [vmem:[#allocation6 + $0xe8] sm:$0xff]
        %v350 = vld [vmem:[#allocation6 + $0xf0] sm:$0xff]
        %v351 = vld [vmem:[#allocation6 + $0xf8] sm:$0xff]
        %v352 = vld [vmem:[%s315] sm:$0xf]
        %v354 = vlaneseq
        %v355 = vshrl.u32 %v354, 7
        %v356 = vsub.s32 0, %v355
        %v357 = vrot.slane %v352, %v356
        %v358 = vlaneseq
        %v359 = vshrl.u32 %v358, 7
        %v360 = vsub.s32 1, %v359
        %v361 = vrot.slane %v352, %v360
        %v362 = vlaneseq
        %v363 = vshrl.u32 %v362, 7
        %v364 = vsub.s32 2, %v363
        %v365 = vrot.slane %v352, %v364
        %v366 = vlaneseq
        %v367 = vshrl.u32 %v366, 7
        %v368 = vsub.s32 3, %v367
        %v369 = vrot.slane %v352, %v368
        %v406 = vunpack.c.l.b16 %v320
        %v407 = vunpack.c.h.b16 %v320
        %v408 = vunpack.c.l.b16 %v321
        %v409 = vunpack.c.h.b16 %v321
        %v410 = vunpack.c.l.b16 %v322
        %v411 = vunpack.c.h.b16 %v322
        %v412 = vunpack.c.l.b16 %v323
        %v413 = vunpack.c.h.b16 %v323
        %v414 = vunpack.c.l.b16 %v324
        %v415 = vunpack.c.h.b16 %v324
        %v416 = vunpack.c.l.b16 %v325
        %v417 = vunpack.c.h.b16 %v325
        %v418 = vunpack.c.l.b16 %v326
        %v419 = vunpack.c.h.b16 %v326
        %v420 = vunpack.c.l.b16 %v327
        %v421 = vunpack.c.h.b16 %v327
        %v422 = vunpack.c.l.b16 %v328
        %v423 = vunpack.c.h.b16 %v328
        %v424 = vunpack.c.l.b16 %v329
        %v425 = vunpack.c.h.b16 %v329
        %v426 = vunpack.c.l.b16 %v330
        %v427 = vunpack.c.h.b16 %v330
        %v428 = vunpack.c.l.b16 %v331
        %v429 = vunpack.c.h.b16 %v331
        %v430 = vunpack.c.l.b16 %v332
        %v431 = vunpack.c.h.b16 %v332
        %v432 = vunpack.c.l.b16 %v333
        %v433 = vunpack.c.h.b16 %v333
        %v434 = vunpack.c.l.b16 %v334
        %v435 = vunpack.c.h.b16 %v334
        %v436 = vunpack.c.l.b16 %v335
        %v437 = vunpack.c.h.b16 %v335
        %v438 = vunpack.c.l.b16 %v336
        %v439 = vunpack.c.h.b16 %v336
        %v440 = vunpack.c.l.b16 %v337
        %v441 = vunpack.c.h.b16 %v337
        %v442 = vunpack.c.l.b16 %v338
        %v443 = vunpack.c.h.b16 %v338
        %v444 = vunpack.c.l.b16 %v339
        %v445 = vunpack.c.h.b16 %v339
        %v446 = vunpack.c.l.b16 %v340
        %v447 = vunpack.c.h.b16 %v340
        %v448 = vunpack.c.l.b16 %v341
        %v449 = vunpack.c.h.b16 %v341
        %v450 = vunpack.c.l.b16 %v342
        %v451 = vunpack.c.h.b16 %v342
        %v452 = vunpack.c.l.b16 %v343
        %v453 = vunpack.c.h.b16 %v343
        %v454 = vunpack.c.l.b16 %v344
        %v455 = vunpack.c.h.b16 %v344
        %v456 = vunpack.c.l.b16 %v345
        %v457 = vunpack.c.h.b16 %v345
        %v458 = vunpack.c.l.b16 %v346
        %v459 = vunpack.c.h.b16 %v346
        %v460 = vunpack.c.l.b16 %v347
        %v461 = vunpack.c.h.b16 %v347
        %v462 = vunpack.c.l.b16 %v348
        %v463 = vunpack.c.h.b16 %v348
        %v464 = vunpack.c.l.b16 %v349
        %v465 = vunpack.c.h.b16 %v349
        %v466 = vunpack.c.l.b16 %v350
        %v467 = vunpack.c.h.b16 %v350
        %v468 = vunpack.c.l.b16 %v351
        %v469 = vunpack.c.h.b16 %v351
        %v470 = vpack.c.b16 %v410, %v406
        %v471 = vpack.c.b16 %v411, %v407
        %v472 = vpack.c.b16 %v412, %v408
        %v473 = vpack.c.b16 %v413, %v409
        %v474 = vpack.c.b16 %v418, %v414
        %v475 = vpack.c.b16 %v419, %v415
        %v476 = vpack.c.b16 %v420, %v416
        %v477 = vpack.c.b16 %v421, %v417
        %v478 = vpack.c.b16 %v426, %v422
        %v479 = vpack.c.b16 %v427, %v423
        %v480 = vpack.c.b16 %v428, %v424
        %v481 = vpack.c.b16 %v429, %v425
        %v482 = vpack.c.b16 %v434, %v430
        %v483 = vpack.c.b16 %v435, %v431
        %v484 = vpack.c.b16 %v436, %v432
        %v485 = vpack.c.b16 %v437, %v433
        %v486 = vpack.c.b16 %v442, %v438
        %v487 = vpack.c.b16 %v443, %v439
        %v488 = vpack.c.b16 %v444, %v440
        %v489 = vpack.c.b16 %v445, %v441
        %v490 = vpack.c.b16 %v450, %v446
        %v491 = vpack.c.b16 %v451, %v447
        %v492 = vpack.c.b16 %v452, %v448
        %v493 = vpack.c.b16 %v453, %v449
        %v494 = vpack.c.b16 %v458, %v454
        %v495 = vpack.c.b16 %v459, %v455
        %v496 = vpack.c.b16 %v460, %v456
        %v497 = vpack.c.b16 %v461, %v457
        %v498 = vpack.c.b16 %v466, %v462
        %v499 = vpack.c.b16 %v467, %v463
        %v500 = vpack.c.b16 %v468, %v464
        %v501 = vpack.c.b16 %v469, %v465
        %534 = vmatprep.subr.bf16.mxu0 %v471
        %535 = vmatpush1.bf16.msra.mxu0 %v470
        %536 = vmatprep.subr.bf16.mxu0 %v475
        %537 = vmatpush1.bf16.msra.mxu0 %v474
        %538 = vmatprep.subr.bf16.mxu0 %v479
        %539 = vmatpush1.bf16.msra.mxu0 %v478
        %540 = vmatprep.subr.bf16.mxu0 %v483
        %541 = vmatpush1.bf16.msra.mxu0 %v482
        %542 = vmatprep.subr.bf16.mxu0 %v487
        %543 = vmatpush1.bf16.msra.mxu0 %v486
        %544 = vmatprep.subr.bf16.mxu0 %v491
        %545 = vmatpush1.bf16.msra.mxu0 %v490
        %546 = vmatprep.subr.bf16.mxu0 %v495
        %547 = vmatpush1.bf16.msra.mxu0 %v494
        %548 = vmatprep.subr.bf16.mxu0 %v499
        %549 = vmatpush1.bf16.msra.mxu0 %v498
        %550 = vmatprep.subr.bf16.mxu0 0
        %551 = vmatpush1.bf16.msra.mxu0 0
        %552 = vmatprep.subr.bf16.mxu0 0
        %553 = vmatpush1.bf16.msra.mxu0 0
        %554 = vmatprep.subr.bf16.mxu0 0
        %555 = vmatpush1.bf16.msra.mxu0 0
        %556 = vmatprep.subr.bf16.mxu0 0
        %557 = vmatpush1.bf16.msra.mxu0 0
        %558 = vmatprep.subr.bf16.mxu0 0
        %559 = vmatpush1.bf16.msra.mxu0 0
        %560 = vmatprep.subr.bf16.mxu0 0
        %561 = vmatpush1.bf16.msra.mxu0 0
        %562 = vmatprep.subr.bf16.mxu0 0
        %563 = vmatpush1.bf16.msra.mxu0 0
        %564 = vmatprep.subr.bf16.mxu0 0
        %565 = vmatpush1.bf16.msra.mxu0 0
        %566 = vmatprep.mubr.bf16.mxu0 0
        %567 = vmatmul.mubr.bf16.gmra.mrb[0].mxu0 %v319
        %v568 = vpop.f32.mrb[0].mxu0
        %v569 = vadd.f32 %v357, %v568
        %v570 = vpop.f32.mrb[0].mxu0
        %v571 = vadd.f32 %v361, %v570
        %v572 = vpop.f32.mrb[0].mxu0
        %v573 = vpop.f32.mrb[0].mxu0
        %574 = vdwg.mxu0
        %575 = vmatprep.subr.bf16.mxu0 %v473
        %576 = vmatpush1.bf16.msra.mxu0 %v472
        %577 = vmatprep.subr.bf16.mxu0 %v477
        %578 = vmatpush1.bf16.msra.mxu0 %v476
        %579 = vmatprep.subr.bf16.mxu0 %v481
        %580 = vmatpush1.bf16.msra.mxu0 %v480
        %581 = vmatprep.subr.bf16.mxu0 %v485
        %582 = vmatpush1.bf16.msra.mxu0 %v484
        %583 = vmatprep.subr.bf16.mxu0 %v489
        %584 = vmatpush1.bf16.msra.mxu0 %v488
        %585 = vmatprep.subr.bf16.mxu0 %v493
        %586 = vmatpush1.bf16.msra.mxu0 %v492
        %587 = vmatprep.subr.bf16.mxu0 %v497
        %588 = vmatpush1.bf16.msra.mxu0 %v496
        %589 = vmatprep.subr.bf16.mxu0 %v501
        %590 = vmatpush1.bf16.msra.mxu0 %v500
        %591 = vmatprep.subr.bf16.mxu0 0
        %592 = vmatpush1.bf16.msra.mxu0 0
        %593 = vmatprep.subr.bf16.mxu0 0
        %594 = vmatpush1.bf16.msra.mxu0 0
        %595 = vmatprep.subr.bf16.mxu0 0
        %596 = vmatpush1.bf16.msra.mxu0 0
        %597 = vmatprep.subr.bf16.mxu0 0
        %598 = vmatpush1.bf16.msra.mxu0 0
        %599 = vmatprep.subr.bf16.mxu0 0
        %600 = vmatpush1.bf16.msra.mxu0 0
        %601 = vmatprep.subr.bf16.mxu0 0
        %602 = vmatpush1.bf16.msra.mxu0 0
        %603 = vmatprep.subr.bf16.mxu0 0
        %604 = vmatpush1.bf16.msra.mxu0 0
        %605 = vmatprep.subr.bf16.mxu0 0
        %606 = vmatpush1.bf16.msra.mxu0 0
        %607 = vmatprep.mubr.bf16.mxu0 0
        %608 = vmatmul.mubr.bf16.gmra.mrb[0].mxu0 %v319
        %v609 = vpop.f32.mrb[0].mxu0
        %v610 = vadd.f32 %v365, %v609
        %v611 = vpop.f32.mrb[0].mxu0
        %v612 = vadd.f32 %v369, %v611
        %v613 = vpop.f32.mrb[0].mxu0
        %v614 = vpop.f32.mrb[0].mxu0
        %615 = vdwg.mxu0
        %v616 = vmul.f32 %v569, %v569
        %v617 = vmul.f32 %v571, %v571
        %v618 = vmul.f32 %v610, %v610
        %v619 = vmul.f32 %v612, %v612
        %v620 = vmul.f32 %v569, 0.5
        %v621 = vmul.f32 %v571, 0.5
        %v622 = vmul.f32 %v610, 0.5
        %v623 = vmul.f32 %v612, 0.5
        %v624 = vmul.f32 %v616, 0.044715
        %v625 = vmul.f32 %v617, 0.044715
        %v626 = vmul.f32 %v618, 0.044715
        %v627 = vmul.f32 %v619, 0.044715
        %v628 = vadd.f32 %v624, 1.0
        %v629 = vadd.f32 %v625, 1.0
        %v630 = vadd.f32 %v626, 1.0
        %v631 = vadd.f32 %v627, 1.0
        %v632 = vmul.f32 %v569, %v628
        %v633 = vmul.f32 %v571, %v629
        %v634 = vmul.f32 %v610, %v630
        %v635 = vmul.f32 %v612, %v631
        %v636 = vmul.f32 %v632, 0.7978846
        %v637 = vmul.f32 %v633, 0.7978846
        %v638 = vmul.f32 %v634, 0.7978846
        %v639 = vmul.f32 %v635, 0.7978846
        %v640 = vtanh.pop %v636
        %v641 = vtanh.pop %v637
        %v642 = vtanh.pop %v638
        %v643 = vtanh.pop %v639
        %v644 = vadd.f32 %v640, 1.0
        %v645 = vadd.f32 %v641, 1.0
        %v646 = vadd.f32 %v642, 1.0
        %v647 = vadd.f32 %v643, 1.0
        %v648 = vmul.f32 %v620, %v644
        %v649 = vmul.f32 %v621, %v645
        %v650 = vmul.f32 %v622, %v646
        %v651 = vmul.f32 %v623, %v647
        %v652 = vpack.c.bf16 %v648, %v648
        %v653 = vpack.c.bf16 %v649, %v649
        %v654 = vpack.c.bf16 %v650, %v650
        %v655 = vpack.c.bf16 %v651, %v651
        %v656 = vld [vmem:[#allocation8] sm:$0xf]
        %v657 = vld [vmem:[#allocation8 + $0x4] sm:$0xf]
        %v658 = vld [vmem:[#allocation8 + $0x8] sm:$0xf]
        %v659 = vld [vmem:[#allocation8 + $0xc] sm:$0xf]
        %v660 = vld [vmem:[#allocation8 + $0x10] sm:$0xf]
        %v661 = vld [vmem:[#allocation8 + $0x14] sm:$0xf]
        %v662 = vld [vmem:[#allocation8 + $0x18] sm:$0xf]
        %v663 = vld [vmem:[#allocation8 + $0x1c] sm:$0xf]
        %v664 = vld [vmem:[#allocation8 + $0x20] sm:$0xf]
        %v665 = vld [vmem:[#allocation8 + $0x24] sm:$0xf]
        %v666 = vld [vmem:[#allocation8 + $0x28] sm:$0xf]
        %v667 = vld [vmem:[#allocation8 + $0x2c] sm:$0xf]
        %v668 = vld [vmem:[#allocation8 + $0x30] sm:$0xf]
        %v669 = vld [vmem:[#allocation8 + $0x34] sm:$0xf]
        %v670 = vld [vmem:[#allocation8 + $0x38] sm:$0xf]
        %v671 = vld [vmem:[#allocation8 + $0x3c] sm:$0xf]
        %v672 = vld [vmem:[#allocation8 + $0x40] sm:$0xf]
        %v673 = vld [vmem:[#allocation8 + $0x44] sm:$0xf]
        %v674 = vld [vmem:[#allocation8 + $0x48] sm:$0xf]
        %v675 = vld [vmem:[#allocation8 + $0x4c] sm:$0xf]
        %v676 = vld [vmem:[#allocation8 + $0x50] sm:$0xf]
        %v677 = vld [vmem:[#allocation8 + $0x54] sm:$0xf]
        %v678 = vld [vmem:[#allocation8 + $0x58] sm:$0xf]
        %v679 = vld [vmem:[#allocation8 + $0x5c] sm:$0xf]
        %v680 = vld [vmem:[#allocation8 + $0x60] sm:$0xf]
        %v681 = vld [vmem:[#allocation8 + $0x64] sm:$0xf]
        %v682 = vld [vmem:[#allocation8 + $0x68] sm:$0xf]
        %v683 = vld [vmem:[#allocation8 + $0x6c] sm:$0xf]
        %v684 = vld [vmem:[#allocation8 + $0x70] sm:$0xf]
        %v685 = vld [vmem:[#allocation8 + $0x74] sm:$0xf]
        %v686 = vld [vmem:[#allocation8 + $0x78] sm:$0xf]
        %v687 = vld [vmem:[#allocation8 + $0x7c] sm:$0xf]
        %v688 = vld [vmem:[#allocation8 + $0x80] sm:$0xf]
        %v689 = vld [vmem:[#allocation8 + $0x84] sm:$0xf]
        %v690 = vld [vmem:[#allocation8 + $0x88] sm:$0xf]
        %v691 = vld [vmem:[#allocation8 + $0x8c] sm:$0xf]
        %v692 = vld [vmem:[#allocation8 + $0x90] sm:$0xf]
        %v693 = vld [vmem:[#allocation8 + $0x94] sm:$0xf]
        %v694 = vld [vmem:[#allocation8 + $0x98] sm:$0xf]
        %v695 = vld [vmem:[#allocation8 + $0x9c] sm:$0xf]
        %v696 = vld [vmem:[#allocation8 + $0xa0] sm:$0xf]
        %v697 = vld [vmem:[#allocation8 + $0xa4] sm:$0xf]
        %v698 = vld [vmem:[#allocation8 + $0xa8] sm:$0xf]
        %v699 = vld [vmem:[#allocation8 + $0xac] sm:$0xf]
        %v700 = vld [vmem:[#allocation8 + $0xb0] sm:$0xf]
        %v701 = vld [vmem:[#allocation8 + $0xb4] sm:$0xf]
        %v702 = vld [vmem:[#allocation8 + $0xb8] sm:$0xf]
        %v703 = vld [vmem:[#allocation8 + $0xbc] sm:$0xf]
        %v704 = vld [vmem:[#allocation8 + $0xc0] sm:$0xf]
        %v705 = vld [vmem:[#allocation8 + $0xc4] sm:$0xf]
        %v706 = vld [vmem:[#allocation8 + $0xc8] sm:$0xf]
        %v707 = vld [vmem:[#allocation8 + $0xcc] sm:$0xf]
        %v708 = vld [vmem:[#allocation8 + $0xd0] sm:$0xf]
        %v709 = vld [vmem:[#allocation8 + $0xd4] sm:$0xf]
        %v710 = vld [vmem:[#allocation8 + $0xd8] sm:$0xf]
        %v711 = vld [vmem:[#allocation8 + $0xdc] sm:$0xf]
        %v712 = vld [vmem:[#allocation8 + $0xe0] sm:$0xf]
        %v713 = vld [vmem:[#allocation8 + $0xe4] sm:$0xf]
        %v714 = vld [vmem:[#allocation8 + $0xe8] sm:$0xf]
        %v715 = vld [vmem:[#allocation8 + $0xec] sm:$0xf]
        %v716 = vld [vmem:[#allocation8 + $0xf0] sm:$0xf]
        %v717 = vld [vmem:[#allocation8 + $0xf4] sm:$0xf]
        %v718 = vld [vmem:[#allocation8 + $0xf8] sm:$0xf]
        %v719 = vld [vmem:[#allocation8 + $0xfc] sm:$0xf]
        %v784 = vunpack.c.l.b16 %v656
        %v785 = vunpack.c.l.b16 %v657
        %v786 = vunpack.c.l.b16 %v658
        %v787 = vunpack.c.l.b16 %v659
        %v788 = vunpack.c.l.b16 %v660
        %v789 = vunpack.c.l.b16 %v661
        %v790 = vunpack.c.l.b16 %v662
        %v791 = vunpack.c.l.b16 %v663
        %v792 = vunpack.c.l.b16 %v664
        %v793 = vunpack.c.l.b16 %v665
        %v794 = vunpack.c.l.b16 %v666
        %v795 = vunpack.c.l.b16 %v667
        %v796 = vunpack.c.l.b16 %v668
        %v797 = vunpack.c.l.b16 %v669
        %v798 = vunpack.c.l.b16 %v670
        %v799 = vunpack.c.l.b16 %v671
        %v800 = vunpack.c.l.b16 %v672
        %v801 = vunpack.c.l.b16 %v673
        %v802 = vunpack.c.l.b16 %v674
        %v803 = vunpack.c.l.b16 %v675
        %v804 = vunpack.c.l.b16 %v676
        %v805 = vunpack.c.l.b16 %v677
        %v806 = vunpack.c.l.b16 %v678
        %v807 = vunpack.c.l.b16 %v679
        %v808 = vunpack.c.l.b16 %v680
        %v809 = vunpack.c.l.b16 %v681
        %v810 = vunpack.c.l.b16 %v682
        %v811 = vunpack.c.l.b16 %v683
        %v812 = vunpack.c.l.b16 %v684
        %v813 = vunpack.c.l.b16 %v685
        %v814 = vunpack.c.l.b16 %v686
        %v815 = vunpack.c.l.b16 %v687
        %v816 = vunpack.c.l.b16 %v688
        %v817 = vunpack.c.l.b16 %v689
        %v818 = vunpack.c.l.b16 %v690
        %v819 = vunpack.c.l.b16 %v691
        %v820 = vunpack.c.l.b16 %v692
        %v821 = vunpack.c.l.b16 %v693
        %v822 = vunpack.c.l.b16 %v694
        %v823 = vunpack.c.l.b16 %v695
        %v824 = vunpack.c.l.b16 %v696
        %v825 = vunpack.c.l.b16 %v697
        %v826 = vunpack.c.l.b16 %v698
        %v827 = vunpack.c.l.b16 %v699
        %v828 = vunpack.c.l.b16 %v700
        %v829 = vunpack.c.l.b16 %v701
        %v830 = vunpack.c.l.b16 %v702
        %v831 = vunpack.c.l.b16 %v703
        %v832 = vunpack.c.l.b16 %v704
        %v833 = vunpack.c.l.b16 %v705
        %v834 = vunpack.c.l.b16 %v706
        %v835 = vunpack.c.l.b16 %v707
        %v836 = vunpack.c.l.b16 %v708
        %v837 = vunpack.c.l.b16 %v709
        %v838 = vunpack.c.l.b16 %v710
        %v839 = vunpack.c.l.b16 %v711
        %v840 = vunpack.c.l.b16 %v712
        %v841 = vunpack.c.l.b16 %v713
        %v842 = vunpack.c.l.b16 %v714
        %v843 = vunpack.c.l.b16 %v715
        %v844 = vunpack.c.l.b16 %v716
        %v845 = vunpack.c.l.b16 %v717
        %v846 = vunpack.c.l.b16 %v718
        %v847 = vunpack.c.l.b16 %v719
        %v848 = vpack.c.b16 %v785, %v784
        %v849 = vpack.c.b16 %v787, %v786
        %v850 = vpack.c.b16 %v789, %v788
        %v851 = vpack.c.b16 %v791, %v790
        %v852 = vpack.c.b16 %v793, %v792
        %v853 = vpack.c.b16 %v795, %v794
        %v854 = vpack.c.b16 %v797, %v796
        %v855 = vpack.c.b16 %v799, %v798
        %v856 = vpack.c.b16 %v801, %v800
        %v857 = vpack.c.b16 %v803, %v802
        %v858 = vpack.c.b16 %v805, %v804
        %v859 = vpack.c.b16 %v807, %v806
        %v860 = vpack.c.b16 %v809, %v808
        %v861 = vpack.c.b16 %v811, %v810
        %v862 = vpack.c.b16 %v813, %v812
        %v863 = vpack.c.b16 %v815, %v814
        %v864 = vpack.c.b16 %v817, %v816
        %v865 = vpack.c.b16 %v819, %v818
        %v866 = vpack.c.b16 %v821, %v820
        %v867 = vpack.c.b16 %v823, %v822
        %v868 = vpack.c.b16 %v825, %v824
        %v869 = vpack.c.b16 %v827, %v826
        %v870 = vpack.c.b16 %v829, %v828
        %v871 = vpack.c.b16 %v831, %v830
        %v872 = vpack.c.b16 %v833, %v832
        %v873 = vpack.c.b16 %v835, %v834
        %v874 = vpack.c.b16 %v837, %v836
        %v875 = vpack.c.b16 %v839, %v838
        %v876 = vpack.c.b16 %v841, %v840
        %v877 = vpack.c.b16 %v843, %v842
        %v878 = vpack.c.b16 %v845, %v844
        %v879 = vpack.c.b16 %v847, %v846
        %912 = vmatprep.subr.bf16.mxu0 0
        %913 = vmatpush1.bf16.msra.mxu0 %v848
        %914 = vmatprep.subr.bf16.mxu0 0
        %915 = vmatpush1.bf16.msra.mxu0 %v849
        %916 = vmatprep.subr.bf16.mxu0 0
        %917 = vmatpush1.bf16.msra.mxu0 %v850
        %918 = vmatprep.subr.bf16.mxu0 0
        %919 = vmatpush1.bf16.msra.mxu0 %v851
        %920 = vmatprep.subr.bf16.mxu0 0
        %921 = vmatpush1.bf16.msra.mxu0 %v852
        %922 = vmatprep.subr.bf16.mxu0 0
        %923 = vmatpush1.bf16.msra.mxu0 %v853
        %924 = vmatprep.subr.bf16.mxu0 0
        %925 = vmatpush1.bf16.msra.mxu0 %v854
        %926 = vmatprep.subr.bf16.mxu0 0
        %927 = vmatpush1.bf16.msra.mxu0 %v855
        %928 = vmatprep.subr.bf16.mxu0 0
        %929 = vmatpush1.bf16.msra.mxu0 %v856
        %930 = vmatprep.subr.bf16.mxu0 0
        %931 = vmatpush1.bf16.msra.mxu0 %v857
        %932 = vmatprep.subr.bf16.mxu0 0
        %933 = vmatpush1.bf16.msra.mxu0 %v858
        %934 = vmatprep.subr.bf16.mxu0 0
        %935 = vmatpush1.bf16.msra.mxu0 %v859
        %936 = vmatprep.subr.bf16.mxu0 0
        %937 = vmatpush1.bf16.msra.mxu0 %v860
        %938 = vmatprep.subr.bf16.mxu0 0
        %939 = vmatpush1.bf16.msra.mxu0 %v861
        %940 = vmatprep.subr.bf16.mxu0 0
        %941 = vmatpush1.bf16.msra.mxu0 %v862
        %942 = vmatprep.subr.bf16.mxu0 0
        %943 = vmatpush1.bf16.msra.mxu0 %v863
        %944 = vmatprep.mubr.bf16.mxu0 %v653
        %945 = vmatmul.mubr.bf16.gmra.mrb[0].mxu0 %v652
        %v946 = vpop.f32.mrb[0].mxu0
        %v947 = vadd.f32 0.0, %v946
        %v948 = vpop.f32.mrb[0].mxu0
        %v949 = vpop.f32.mrb[0].mxu0
        %v950 = vpop.f32.mrb[0].mxu0
        %951 = vdwg.mxu0
        %952 = vmatprep.subr.bf16.mxu0 0
        %953 = vmatpush1.bf16.msra.mxu0 %v864
        %954 = vmatprep.subr.bf16.mxu0 0
        %955 = vmatpush1.bf16.msra.mxu0 %v865
        %956 = vmatprep.subr.bf16.mxu0 0
        %957 = vmatpush1.bf16.msra.mxu0 %v866
        %958 = vmatprep.subr.bf16.mxu0 0
        %959 = vmatpush1.bf16.msra.mxu0 %v867
        %960 = vmatprep.subr.bf16.mxu0 0
        %961 = vmatpush1.bf16.msra.mxu0 %v868
        %962 = vmatprep.subr.bf16.mxu0 0
        %963 = vmatpush1.bf16.msra.mxu0 %v869
        %964 = vmatprep.subr.bf16.mxu0 0
        %965 = vmatpush1.bf16.msra.mxu0 %v870
        %966 = vmatprep.subr.bf16.mxu0 0
        %967 = vmatpush1.bf16.msra.mxu0 %v871
        %968 = vmatprep.subr.bf16.mxu0 0
        %969 = vmatpush1.bf16.msra.mxu0 %v872
        %970 = vmatprep.subr.bf16.mxu0 0
        %971 = vmatpush1.bf16.msra.mxu0 %v873
        %972 = vmatprep.subr.bf16.mxu0 0
        %973 = vmatpush1.bf16.msra.mxu0 %v874
        %974 = vmatprep.subr.bf16.mxu0 0
        %975 = vmatpush1.bf16.msra.mxu0 %v875
        %976 = vmatprep.subr.bf16.mxu0 0
        %977 = vmatpush1.bf16.msra.mxu0 %v876
        %978 = vmatprep.subr.bf16.mxu0 0
        %979 = vmatpush1.bf16.msra.mxu0 %v877
        %980 = vmatprep.subr.bf16.mxu0 0
        %981 = vmatpush1.bf16.msra.mxu0 %v878
        %982 = vmatprep.subr.bf16.mxu0 0
        %983 = vmatpush1.bf16.msra.mxu0 %v879
        %984 = vmatprep.mubr.bf16.mxu0 %v655
        %985 = vmatmul.mubr.bf16.gmra.mrb[0].mxu0 %v654
        %v986 = vpop.f32.mrb[0].mxu0
        %v987 = vadd.f32 %v947, %v986
        %v988 = vpop.f32.mrb[0].mxu0
        %v989 = vpop.f32.mrb[0].mxu0
        %v990 = vpop.f32.mrb[0].mxu0
        %991 = vdwg.mxu0
        %p992 = scmp.eq.s32.totalorder %s28, 0
        // Predicated region
        $region53: #{tpu_custom_call.1} parent=39 // pred_check
          %p993 = pneg %p992
        $region54: #{tpu_custom_call.1} parent=39 // pred_check_branch
          %995 = sbr.rel (%p993) target = $region56
        $region55: #{tpu_custom_call.1} parent=39 // pred_region
          %v996 = vld [vmem:[%s4] sm:$0x1]
          %v998 = vlaneseq
          %v999 = vshrl.u32 %v998, 7
          %v1000 = vsub.s32 0, %v999
          %v1001 = vrot.slane %v996, %v1000
          %v1003 = vadd.f32 %v987, %v1001
          %1004 = vst [vmem:[#allocation2] sm:$0xff] %v1003
        $region56: #{tpu_custom_call.1} parent=39 // pred_fallthru
          _
        %p1005 = scmp.gt.s32.totalorder %s28, 0
        // Predicated region
        $region57: #{tpu_custom_call.1} parent=39 // pred_check
          %p1006 = pneg %p1005
        $region58: #{tpu_custom_call.1} parent=39 // pred_check_branch
          %1008 = sbr.rel (%p1006) target = $region60
        $region59: #{tpu_custom_call.1} parent=39 // pred_region
          %v1009 = vld [vmem:[#allocation2] sm:$0xff]
          %v1010 = vadd.f32 %v1009, %v987
          %1011 = vst [vmem:[#allocation2] sm:$0xff] %v1010
        $region60: #{tpu_custom_call.1} parent=39 // pred_fallthru
          _
        // Predicated region
        $region61: #{tpu_custom_call.1} parent=39 // pred_check
          %p1012 = pneg %p992
        $region62: #{tpu_custom_call.1} parent=39 // pred_check_branch
          %1014 = sbr.rel (%p1012) target = $region64
        $region63: #{tpu_custom_call.1} parent=39 // pred_region
          %v1015 = vld [vmem:[#allocation2] sm:$0xff]
          %1016 = vst [vmem:[%s310] sm:$0xff] %v1015
        $region64: #{tpu_custom_call.1} parent=39 // pred_fallthru
          _
        %s1017 = sand.u32 %s168, 1
        %s1018 = scalar_lea.sflag [#allocation5], %s1017
        %s1019 = sand.u32 %s168, 1
        %s1020 = smul.addr %s1019, 8
        %s1021 = scalar_lea.vmem [#allocation9], %s1020
        // Predicated region
        $region65: #{tpu_custom_call.1} parent=39 // pred_check
          %p1022 = pneg %p178
        $region66: #{tpu_custom_call.1} parent=39 // pred_check_branch
          %1024 = sbr.rel (%p1022) target = $region68
        $region67: #{tpu_custom_call.1} parent=39 // pred_region
          %s1026 = ssub.s32 128, 128
          %1027 = vsyncadd %s1018, %s1026
          %s1028 = smul.addr %s27, 128
          %s1029 = scalar_lea.hbm %s5, %s1028
          %s1031 = sshll.u32 %s1021, 4
          %s1032 = int_to_ptr.vmem [resolvable:$true] %s1031
          %1034 = dma.vmem_to_hbm [thread:$0]  %s1032, 128, %s1029, %s1018
        $region68: #{tpu_custom_call.1} parent=39 // pred_fallthru
          _
      $region40: #{tpu_custom_call.1} parent=5 // pred_fallthru
        _
      %p1035 = scmp.le.s32.totalorder 2, %s18
      // Predicated region
      $region69: #{tpu_custom_call.1} parent=5 // pred_check
        %p1036 = pneg %p1035
      $region70: #{tpu_custom_call.1} parent=5 // pred_check_branch
        %1038 = sbr.rel (%p1036) target = $region72
      $region71: #{tpu_custom_call.1} parent=5 // pred_region
        %s1039 = ssub.s32 %s18, 2
        // Predicated region
        $region73: #{tpu_custom_call.1} parent=71 // pred_check
          %p1040 = pneg %p184
        $region74: #{tpu_custom_call.1} parent=71 // pred_check_branch
          %1042 = sbr.rel (%p1040) target = $region76
        $region75: #{tpu_custom_call.1} parent=71 // pred_region
          %s1043 = sand.u32 %s169, 1
          %s1044 = scalar_lea.sflag [#allocation5], %s1043
          %s1045 = sand.u32 %s169, 1
          %s1046 = smul.addr %s1045, 8
          %s1047 = scalar_lea.vmem [#allocation9], %s1046
          %1048 = dma.done %s1044, 128
        $region76: #{tpu_custom_call.1} parent=71 // pred_fallthru
          _
      $region72: #{tpu_custom_call.1} parent=5 // pred_fallthru
        _
    $region6: #{tpu_custom_call.1} parent=1 // loop_footer
      %s22 = sadd.s32 1, %s18
    $region7: #{tpu_custom_call.1} parent=1 // loop_footer_branch
      %17 = sbr.rel target = $region3
    $region8: #{tpu_custom_call.1} parent=1 // loop_exit
      _
    %1049 = vsyncpa [#allocation4], 1
    %s1050 = scalar_lea.sflag [#allocation4], 1
    %1051 = vsyncpa %s1050, 1
    %1052 = vsyncpa [#allocation7], 1
    %1053 = vsyncpa [#allocation5], 1
    %s1054 = scalar_lea.sflag [#allocation5], 1
    %1055 = vsyncpa %s1054, 1

</llo_original>
